<compile_context>
chip_gen: v7x
topology: tpu7x:2x2x1
jax: 0.10.0
libtpu: 0.0.40
codegen_flags: <defaults>
</compile_context>

<pallas_src>
import jax
import jax.numpy as jnp
from jax.experimental import pallas as pl
from jax.experimental.pallas import tpu as pltpu


def _round_up(x, m):
    return (x + m - 1) // m * m


def mlp_fused_kernel(x_ref, w1_ref, b1_ref, w2_ref, b2_ref, o_ref):
    # Layer 1: Linear (bf16 MXU matmul, f32 accumulate) + bias + ReLU.
    h = jnp.dot(x_ref[...], w1_ref[...], preferred_element_type=jnp.float32)
    h = jnp.maximum(h + b1_ref[...], 0.0)                       # (rows, Dhp) f32

    # Row-wise L2 normalization (torch F.normalize(p=2, dim=1), eps=1e-12).
    # max(norm,1e-12)^2 == max(sumsq,1e-24), so a single rsqrt (EUP) suffices.
    # Padded hidden columns are exactly zero (zero-padded W1/b1) -> norm unaffected.
    sumsq = jnp.sum(h * h, axis=1, keepdims=True)                # (rows, 1)
    h = h * jax.lax.rsqrt(jnp.maximum(sumsq, 1e-24))

    # Layer 2: Linear (no activation / no l2norm on the final layer).
    o = jnp.dot(h.astype(w2_ref.dtype), w2_ref[...],
                preferred_element_type=jnp.float32) + b2_ref[...]
    o_ref[...] = o.astype(o_ref.dtype)


def prepare_mlp_params(w1, b1, w2, b2, *, mm_dtype=jnp.bfloat16):
    """Pad weights/biases ONCE (model init), not per forward call."""
    d_in, d_h = w1.shape
    d_out = w2.shape[1]
    Dip = _round_up(d_in, 128)
    Dhp = _round_up(d_h, 128)
    Dop = _round_up(d_out, 128)
    w1p = jnp.zeros((Dip, Dhp), mm_dtype).at[:d_in, :d_h].set(w1.astype(mm_dtype))
    w2p = jnp.zeros((Dhp, Dop), mm_dtype).at[:d_h, :d_out].set(w2.astype(mm_dtype))
    b1p = jnp.zeros((1, Dhp), jnp.float32).at[0, :d_h].set(b1.astype(jnp.float32))
    b2p = jnp.zeros((1, Dop), jnp.float32).at[0, :d_out].set(b2.astype(jnp.float32))
    return {
        "w1p": w1p, "b1p": b1p, "w2p": w2p, "b2p": b2p,
        "d_in": d_in, "d_h": d_h, "d_out": d_out,
        "Dip": Dip, "Dhp": Dhp, "Dop": Dop, "mm_dtype": mm_dtype,
    }


def mlp_forward(x, params, *, block_rows=512, out_dtype=jnp.float32):
    """Fused graphgym-MLP forward. x: (N, d_in); params from prepare_mlp_params."""
    N = x.shape[0]
    d_in, d_out = params["d_in"], params["d_out"]
    Dip, Dhp, Dop = params["Dip"], params["Dhp"], params["Dop"]
    mm_dtype = params["mm_dtype"]

    # Row tiling: 16-aligned (bf16 sublane packing); tiny N -> single grid step.
    rows_min = _round_up(max(N, 1), 16)
    br = _round_up(min(block_rows, rows_min), 16)
    Np = _round_up(rows_min, br)

    # Only x is padded per call; weights were padded once at init.
    xp = jnp.zeros((Np, Dip), mm_dtype).at[:N, :d_in].set(x.astype(mm_dtype))

    # Actual VMEM footprint (x/out tiles double-buffered, weights single-buffered,
    # f32 intermediate h), with 2x headroom; 16 MiB floor, 96 MiB ceiling.
    mm_b = jnp.dtype(mm_dtype).itemsize
    out_b = jnp.dtype(out_dtype).itemsize
    footprint = (2 * br * Dip * mm_b              # x tile (double-buffered)
                 + 2 * br * Dop * out_b           # out tile (double-buffered)
                 + Dip * Dhp * mm_b               # W1 (single-buffered, resident)
                 + Dhp * Dop * mm_b               # W2 (single-buffered, resident)
                 + (Dhp + Dop) * 4                # biases
                 + 2 * br * Dhp * 4)              # f32 intermediate h (headroom)
    vmem_limit = int(min(max(2 * footprint, 16 << 20), 96 << 20))

    resident = dict(pipeline_mode=pl.Buffered(1))  # constant index map -> no pipelining
    grid = (Np // br,)
    out_pad = pl.pallas_call(
        mlp_fused_kernel,
        out_shape=jax.ShapeDtypeStruct((Np, Dop), out_dtype),
        grid_spec=pltpu.PrefetchScalarGridSpec(
            num_scalar_prefetch=0,
            grid=grid,
            in_specs=[
                pl.BlockSpec((br, Dip), lambda i: (i, 0)),               # x row tile
                pl.BlockSpec((Dip, Dhp), lambda i: (0, 0), **resident),  # W1 (resident)
                pl.BlockSpec((1, Dhp), lambda i: (0, 0), **resident),    # b1 (resident)
                pl.BlockSpec((Dhp, Dop), lambda i: (0, 0), **resident),  # W2 (resident)
                pl.BlockSpec((1, Dop), lambda i: (0, 0), **resident),    # b2 (resident)
            ],
            out_specs=pl.BlockSpec((br, Dop), lambda i: (i, 0)),
        ),
        compiler_params=pltpu.CompilerParams(
            dimension_semantics=("parallel",),
            vmem_limit_bytes=vmem_limit,
        ),
    )(xp, params["w1p"], params["b1p"], params["w2p"], params["b2p"])

    return out_pad[:N, :d_out]


def mlp_ref(x, w1, b1, w2, b2, *, use_bf16=True):
    """Pure-JAX reference matching the kernel numerics (bf16 matmul inputs, f32 math)."""
    if use_bf16:
        cast = lambda a: a.astype(jnp.bfloat16).astype(jnp.float32)
    else:
        cast = lambda a: a
    h = cast(x) @ cast(w1) + b1
    h = jnp.maximum(h, 0.0)
    h = h / jnp.maximum(jnp.linalg.norm(h, axis=1, keepdims=True), 1e-12)
    return cast(h) @ cast(w2) + b2


if __name__ == "__main__":
    key = jax.random.PRNGKey(0)
    k1, k2, k3, k4, k5 = jax.random.split(key, 5)

    # MLP(LayerConfig(dim_in=16, dim_out=32, num_layers=2)); dim_inner defaults to dim_in.
    N, d_in, d_out = 200, 16, 32
    d_inner = d_in

    x = jax.random.normal(k1, (N, d_in), dtype=jnp.float32)
    w1 = 0.2 * jax.random.normal(k2, (d_in, d_inner), dtype=jnp.float32)
    b1 = 0.1 * jax.random.normal(k3, (d_inner,), dtype=jnp.float32)
    w2 = 0.2 * jax.random.normal(k4, (d_inner, d_out), dtype=jnp.float32)
    b2 = 0.1 * jax.random.normal(k5, (d_out,), dtype=jnp.float32)

    params = prepare_mlp_params(w1, b1, w2, b2)          # padded once, reused per call
    out = mlp_forward(x, params)                         # f32 output (default)
    jax.block_until_ready(out)

    ref = mlp_ref(x, w1, b1, w2, b2)
    assert out.shape == (N, d_out) and out.dtype == jnp.float32
    max_err = float(jnp.max(jnp.abs(out - ref)))
    assert jnp.allclose(out, ref, atol=2e-3, rtol=2e-3), max_err

    # Optional bf16 output stream (halves the dominant HBM write when tolerated).
    out_bf16 = mlp_forward(x, params, out_dtype=jnp.bfloat16)
    jax.block_until_ready(out_bf16)
    assert jnp.allclose(out_bf16.astype(jnp.float32), ref, atol=3e-2, rtol=3e-2)

    print("KERNEL_OK")
</pallas_src>

<mosaic_0001>
module attributes {stable_mosaic.version = 11 : i64} {
  func.func @mlp_fused_kernel(%arg0: i32, %arg1: memref<208x128xbf16, #tpu.memory_space<vmem>>, %arg2: memref<128x128xbf16, #tpu.memory_space<vmem>>, %arg3: memref<1x128xf32, #tpu.memory_space<vmem>>, %arg4: memref<128x128xbf16, #tpu.memory_space<vmem>>, %arg5: memref<1x128xf32, #tpu.memory_space<vmem>>, %arg6: memref<208x128xf32, #tpu.memory_space<vmem>>) attributes {dimension_semantics = [#tpu.dimension_semantics<parallel>], iteration_bounds = array<i64: 1>, scalar_prefetch = 0 : i64, scratch_operands = 0 : i64, tpu.core_type = #tpu.core_type<tc>, window_params = [{transform_indices = @transform_0, window_bounds = array<i64: 208, 128>}, {pipeline_mode = #tpu.pipeline_mode<synchronous>, transform_indices = @transform_1, window_bounds = array<i64: 128, 128>}, {pipeline_mode = #tpu.pipeline_mode<synchronous>, transform_indices = @transform_2, window_bounds = array<i64: 1, 128>}, {pipeline_mode = #tpu.pipeline_mode<synchronous>, transform_indices = @transform_3, window_bounds = array<i64: 128, 128>}, {pipeline_mode = #tpu.pipeline_mode<synchronous>, transform_indices = @transform_4, window_bounds = array<i64: 1, 128>}, {transform_indices = @transform_5, window_bounds = array<i64: 208, 128>}]} {
    %c0 = arith.constant 0 : index
    %c0_0 = arith.constant 0 : index
    %0 = vector.load %arg1[%c0, %c0_0] : memref<208x128xbf16, #tpu.memory_space<vmem>>, vector<208x128xbf16>
    %c0_1 = arith.constant 0 : index
    %c0_2 = arith.constant 0 : index
    %1 = vector.load %arg2[%c0_1, %c0_2] : memref<128x128xbf16, #tpu.memory_space<vmem>>, vector<128x128xbf16>
    %cst = arith.constant dense<0.000000e+00> : vector<208x128xf32>
    %2 = tpu.matmul %0, %1, %cst {dimension_numbers = #tpu.dot_dimension_numbers<[1], [0], [0], [1], [0, 0, 1, 1], [], []>} : vector<208x128xbf16>, vector<128x128xbf16>, vector<208x128xf32> -> vector<208x128xf32>
    %c0_3 = arith.constant 0 : index
    %c0_4 = arith.constant 0 : index
    %3 = vector.load %arg3[%c0_3, %c0_4] : memref<1x128xf32, #tpu.memory_space<vmem>>, vector<1x128xf32>
    %4 = vector.broadcast %3 : vector<1x128xf32> to vector<208x128xf32>
    %5 = arith.addf %2, %4 : vector<208x128xf32>
    %cst_5 = arith.constant 0.000000e+00 : f32
    %6 = vector.broadcast %cst_5 : f32 to vector<208x128xf32>
    %7 = arith.maximumf %5, %6 : vector<208x128xf32>
    %8 = arith.mulf %7, %7 : vector<208x128xf32>
    %cst_6 = arith.constant dense<0.000000e+00> : vector<208xf32>
    %9 = vector.multi_reduction <add>, %8, %cst_6 [1] : vector<208x128xf32> to vector<208xf32>
    %10 = vector.shape_cast %9 : vector<208xf32> to vector<208x1xf32>
    %cst_7 = arith.constant 1.000000e-24 : f32
    %11 = vector.broadcast %cst_7 : f32 to vector<208x1xf32>
    %12 = arith.maximumf %10, %11 : vector<208x1xf32>
    %13 = math.rsqrt %12 : vector<208x1xf32>
    %14 = vector.broadcast %13 : vector<208x1xf32> to vector<208x128xf32>
    %15 = arith.mulf %7, %14 : vector<208x128xf32>
    %16 = arith.truncf %15 : vector<208x128xf32> to vector<208x128xbf16>
    %c0_8 = arith.constant 0 : index
    %c0_9 = arith.constant 0 : index
    %17 = vector.load %arg4[%c0_8, %c0_9] : memref<128x128xbf16, #tpu.memory_space<vmem>>, vector<128x128xbf16>
    %cst_10 = arith.constant dense<0.000000e+00> : vector<208x128xf32>
    %18 = tpu.matmul %16, %17, %cst_10 {dimension_numbers = #tpu.dot_dimension_numbers<[1], [0], [0], [1], [0, 0, 1, 1], [], []>} : vector<208x128xbf16>, vector<128x128xbf16>, vector<208x128xf32> -> vector<208x128xf32>
    %c0_11 = arith.constant 0 : index
    %c0_12 = arith.constant 0 : index
    %19 = vector.load %arg5[%c0_11, %c0_12] : memref<1x128xf32, #tpu.memory_space<vmem>>, vector<1x128xf32>
    %20 = vector.broadcast %19 : vector<1x128xf32> to vector<208x128xf32>
    %21 = arith.addf %18, %20 : vector<208x128xf32>
    %c0_13 = arith.constant 0 : index
    %c0_14 = arith.constant 0 : index
    %22 = vector.load %arg6[%c0_13, %c0_14] : memref<208x128xf32, #tpu.memory_space<vmem>>, vector<208x128xf32>
    tpu.vector_store %arg6[%c0_13, %c0_14], %21 {strides = array<i32>} : memref<208x128xf32, #tpu.memory_space<vmem>>, vector<208x128xf32>,
    return
  }
  func.func @transform_0(%arg0: i32) -> (i32, i32) {
    %c0_i32 = arith.constant 0 : i32
    %c0_i32_0 = arith.constant 0 : i32
    return %arg0, %c0_i32 : i32, i32
  }
  func.func @transform_1(%arg0: i32) -> (i32, i32) {
    %c0_i32 = arith.constant 0 : i32
    %c0_i32_0 = arith.constant 0 : i32
    %c0_i32_1 = arith.constant 0 : i32
    return %c0_i32, %c0_i32_0 : i32, i32
  }
  func.func @transform_2(%arg0: i32) -> (i32, i32) {
    %c0_i32 = arith.constant 0 : i32
    %c0_i32_0 = arith.constant 0 : i32
    %c0_i32_1 = arith.constant 0 : i32
    return %c0_i32, %c0_i32_0 : i32, i32
  }
  func.func @transform_3(%arg0: i32) -> (i32, i32) {
    %c0_i32 = arith.constant 0 : i32
    %c0_i32_0 = arith.constant 0 : i32
    %c0_i32_1 = arith.constant 0 : i32
    return %c0_i32, %c0_i32_0 : i32, i32
  }
  func.func @transform_4(%arg0: i32) -> (i32, i32) {
    %c0_i32 = arith.constant 0 : i32
    %c0_i32_0 = arith.constant 0 : i32
    %c0_i32_1 = arith.constant 0 : i32
    return %c0_i32, %c0_i32_0 : i32, i32
  }
  func.func @transform_5(%arg0: i32) -> (i32, i32) {
    %c0_i32 = arith.constant 0 : i32
    %c0_i32_0 = arith.constant 0 : i32
    return %arg0, %c0_i32 : i32, i32
  }
}

</mosaic_0001>

<llo_original>
// kernel: tpu_custom_call.1
$region0: #{tpu_custom_call.1}
  #allocation0 [shape = 'u32[]', space=smem, size = 0x4, offset = 0x4, fixed_abs, tag = 'smem constant byte address 0x4 - core index']
  #allocation1 [shape = 'u32[144,128]{1,0:T(1,128)}', space=vmem, size = 0x12000, scoped, tag = 'internal scratch']
  %s0 = inlined_call_operand.hbm [shape: bf16[208,128], index: 0, kind: input, shape index: {}]
  %s1 = inlined_call_operand.hbm [shape: bf16[128,128], index: 1, kind: input, shape index: {}]
  %s2 = inlined_call_operand.vmem [shape: f32[1,128], index: 2, kind: input, shape index: {}]
  %s3 = inlined_call_operand.hbm [shape: bf16[128,128], index: 3, kind: input, shape index: {}]
  %s4 = inlined_call_operand.vmem [shape: f32[1,128], index: 4, kind: input, shape index: {}]
  %s5 = inlined_call_operand.hbm [shape: f32[208,128], index: 5, kind: output, shape index: {}]
  %s6 = sld [smem:[#allocation0]]
  $region42: #{tpu_custom_call.1} parent=0
    _
  %s8 = ssub.s32 1, %s6
  %s9 = scalar_select 0, %s8, %s6
  $region1: #{tpu_custom_call.1} parent=0
    #allocation2 [shape = 'u8[53248]{0}', space=vmem, size = 0xd000, scoped, tag = 'input window, operand 0, single buffered']
    #allocation3 [shape = 's32[1]{0}', space=sflag, size = 0x4, scoped, tag = 'scoped memory for tpu_custom_call.1']
    #allocation4 [shape = 's32[1]{0}', space=sflag, size = 0x4, scoped, tag = 'scoped memory for tpu_custom_call.1']
    #allocation5 [shape = 'u8[32768]{0}', space=vmem, size = 0x8000, scoped, tag = 'input window, operand 1, single buffered']
    #allocation6 [shape = 's32[1]{0}', space=sflag, size = 0x4, scoped, tag = 'scoped memory for tpu_custom_call.1']
    #allocation7 [shape = 'u8[32768]{0}', space=vmem, size = 0x8000, scoped, tag = 'input window, operand 3, single buffered']
    #allocation8 [shape = 'u8[106496]{0}', space=vmem, size = 0x1a000, scoped, tag = 'output window, operand 0, single buffered']
    %10 = vsyncpa [#allocation3], 0
    %11 = vsyncpa [#allocation6], 0
    %12 = vsyncpa [#allocation4], 0
    // Predicated region
    $region2: #{tpu_custom_call.1} parent=1 // pred_check
      _
    $region3: #{tpu_custom_call.1} parent=1 // pred_check_branch
      %14 = sbr.rel (0) target = $region5
    $region4: #{tpu_custom_call.1} parent=1 // pred_region
      %s16 = ssub.s32 1664, 1664
      %17 = vsyncadd [#allocation3], %s16
      %s18 = sshll.u32 [#allocation2], 4
      %s19 = int_to_ptr.vmem [resolvable:$true] %s18
      %24 = dma.hbm_to_vmem [thread:$0]  %s0, 1664, %s19, [#allocation3], 64, 64, 4
    $region5: #{tpu_custom_call.1} parent=1 // pred_fallthru
      _
    // Predicated region
    $region6: #{tpu_custom_call.1} parent=1 // pred_check
      _
    $region7: #{tpu_custom_call.1} parent=1 // pred_check_branch
      %26 = sbr.rel (0) target = $region9
    $region8: #{tpu_custom_call.1} parent=1 // pred_region
      %s28 = ssub.s32 1024, 1024
      %29 = vsyncadd [#allocation6], %s28
      %s30 = sshll.u32 [#allocation5], 4
      %s31 = int_to_ptr.vmem [resolvable:$true] %s30
      %36 = dma.hbm_to_vmem [thread:$0]  %s1, 1024, %s31, [#allocation6], 64, 64, 4
    $region9: #{tpu_custom_call.1} parent=1 // pred_fallthru
      _
    // Predicated region
    $region10: #{tpu_custom_call.1} parent=1 // pred_check
      _
    $region11: #{tpu_custom_call.1} parent=1 // pred_check_branch
      %38 = sbr.rel (0) target = $region13
    $region12: #{tpu_custom_call.1} parent=1 // pred_region
      _
    $region13: #{tpu_custom_call.1} parent=1 // pred_fallthru
      _
    // Predicated region
    $region14: #{tpu_custom_call.1} parent=1 // pred_check
      _
    $region15: #{tpu_custom_call.1} parent=1 // pred_check_branch
      %40 = sbr.rel (0) target = $region17
    $region16: #{tpu_custom_call.1} parent=1 // pred_region
      %s42 = ssub.s32 1024, 1024
      %43 = vsyncadd [#allocation6], %s42
      %s44 = sshll.u32 [#allocation7], 4
      %s45 = int_to_ptr.vmem [resolvable:$true] %s44
      %50 = dma.hbm_to_vmem [thread:$0]  %s3, 1024, %s45, [#allocation6], 64, 64, 4
    $region17: #{tpu_custom_call.1} parent=1 // pred_fallthru
      _
    // Predicated region
    $region18: #{tpu_custom_call.1} parent=1 // pred_check
      _
    $region19: #{tpu_custom_call.1} parent=1 // pred_check_branch
      %52 = sbr.rel (0) target = $region21
    $region20: #{tpu_custom_call.1} parent=1 // pred_region
      _
    $region21: #{tpu_custom_call.1} parent=1 // pred_fallthru
      _
    // Predicated region
    $region22: #{tpu_custom_call.1} parent=1 // pred_check
      _
    $region23: #{tpu_custom_call.1} parent=1 // pred_check_branch
      %54 = sbr.rel (0) target = $region25
    $region24: #{tpu_custom_call.1} parent=1 // pred_region
      %55 = dma.done [#allocation3], 1664
    $region25: #{tpu_custom_call.1} parent=1 // pred_fallthru
      _
    // Predicated region
    $region26: #{tpu_custom_call.1} parent=1 // pred_check
      _
    $region27: #{tpu_custom_call.1} parent=1 // pred_check_branch
      %57 = sbr.rel (0) target = $region29
    $region28: #{tpu_custom_call.1} parent=1 // pred_region
      %58 = dma.done [#allocation6], 1024
    $region29: #{tpu_custom_call.1} parent=1 // pred_fallthru
      _
    // Predicated region
    $region30: #{tpu_custom_call.1} parent=1 // pred_check
      _
    $region31: #{tpu_custom_call.1} parent=1 // pred_check_branch
      %60 = sbr.rel (0) target = $region33
    $region32: #{tpu_custom_call.1} parent=1 // pred_region
      %61 = dma.done [#allocation6], 1024
    $region33: #{tpu_custom_call.1} parent=1 // pred_fallthru
      _
    %v63 = vld [vmem:[#allocation2] sm:$0xf]
    %v64 = vld [vmem:[#allocation2 + $0x4] sm:$0xf]
    %v65 = vld [vmem:[#allocation2 + $0x8] sm:$0xf]
    %v66 = vld [vmem:[#allocation2 + $0xc] sm:$0xf]
    %v67 = vld [vmem:[#allocation2 + $0x10] sm:$0xf]
    %v68 = vld [vmem:[#allocation2 + $0x14] sm:$0xf]
    %v69 = vld [vmem:[#allocation2 + $0x18] sm:$0xf]
    %v70 = vld [vmem:[#allocation2 + $0x1c] sm:$0xf]
    %v71 = vld [vmem:[#allocation2 + $0x20] sm:$0xf]
    %v72 = vld [vmem:[#allocation2 + $0x24] sm:$0xf]
    %v73 = vld [vmem:[#allocation2 + $0x28] sm:$0xf]
    %v74 = vld [vmem:[#allocation2 + $0x2c] sm:$0xf]
    %v75 = vld [vmem:[#allocation2 + $0x30] sm:$0xf]
    %v76 = vld [vmem:[#allocation2 + $0x34] sm:$0xf]
    %v77 = vld [vmem:[#allocation2 + $0x38] sm:$0xf]
    %v78 = vld [vmem:[#allocation2 + $0x3c] sm:$0xf]
    %v79 = vld [vmem:[#allocation2 + $0x40] sm:$0xf]
    %v80 = vld [vmem:[#allocation2 + $0x44] sm:$0xf]
    %v81 = vld [vmem:[#allocation2 + $0x48] sm:$0xf]
    %v82 = vld [vmem:[#allocation2 + $0x4c] sm:$0xf]
    %v83 = vld [vmem:[#allocation2 + $0x50] sm:$0xf]
    %v84 = vld [vmem:[#allocation2 + $0x54] sm:$0xf]
    %v85 = vld [vmem:[#allocation2 + $0x58] sm:$0xf]
    %v86 = vld [vmem:[#allocation2 + $0x5c] sm:$0xf]
    %v87 = vld [vmem:[#allocation2 + $0x60] sm:$0xf]
    %v88 = vld [vmem:[#allocation2 + $0x64] sm:$0xf]
    %v89 = vld [vmem:[#allocation5] sm:$0xf]
    %v90 = vld [vmem:[#allocation5 + $0x4] sm:$0xf]
    %v91 = vld [vmem:[#allocation5 + $0x8] sm:$0xf]
    %v92 = vld [vmem:[#allocation5 + $0xc] sm:$0xf]
    %v93 = vld [vmem:[#allocation5 + $0x10] sm:$0xf]
    %v94 = vld [vmem:[#allocation5 + $0x14] sm:$0xf]
    %v95 = vld [vmem:[#allocation5 + $0x18] sm:$0xf]
    %v96 = vld [vmem:[#allocation5 + $0x1c] sm:$0xf]
    %v97 = vld [vmem:[#allocation5 + $0x20] sm:$0xf]
    %v98 = vld [vmem:[#allocation5 + $0x24] sm:$0xf]
    %v99 = vld [vmem:[#allocation5 + $0x28] sm:$0xf]
    %v100 = vld [vmem:[#allocation5 + $0x2c] sm:$0xf]
    %v101 = vld [vmem:[#allocation5 + $0x30] sm:$0xf]
    %v102 = vld [vmem:[#allocation5 + $0x34] sm:$0xf]
    %v103 = vld [vmem:[#allocation5 + $0x38] sm:$0xf]
    %v104 = vld [vmem:[#allocation5 + $0x3c] sm:$0xf]
    %v105 = vld [vmem:[%s2] sm:$0x1]
    %v107 = vlaneseq
    %v108 = vshrl.u32 %v107, 7
    %v109 = vsub.s32 0, %v108
    %v110 = vrot.slane %v105, %v109
    %v138 = vunpack.c.l.b16 %v63
    %v139 = vunpack.c.l.b16 %v64
    %v140 = vunpack.c.l.b16 %v65
    %v141 = vunpack.c.l.b16 %v66
    %v142 = vunpack.c.l.b16 %v67
    %v143 = vunpack.c.l.b16 %v68
    %v144 = vunpack.c.l.b16 %v69
    %v145 = vunpack.c.l.b16 %v70
    %v146 = vunpack.c.l.b16 %v71
    %v147 = vunpack.c.l.b16 %v72
    %v148 = vunpack.c.l.b16 %v73
    %v149 = vunpack.c.l.b16 %v74
    %v150 = vunpack.c.l.b16 %v75
    %v151 = vunpack.c.l.b16 %v76
    %v152 = vunpack.c.l.b16 %v77
    %v153 = vunpack.c.l.b16 %v78
    %v154 = vunpack.c.l.b16 %v79
    %v155 = vunpack.c.l.b16 %v80
    %v156 = vunpack.c.l.b16 %v81
    %v157 = vunpack.c.l.b16 %v82
    %v158 = vunpack.c.l.b16 %v83
    %v159 = vunpack.c.l.b16 %v84
    %v160 = vunpack.c.l.b16 %v85
    %v161 = vunpack.c.l.b16 %v86
    %v162 = vunpack.c.l.b16 %v87
    %v163 = vunpack.c.l.b16 %v88
    %v164 = vpack.c.b16 %v139, %v138
    %v165 = vpack.c.b16 %v141, %v140
    %v166 = vpack.c.b16 %v143, %v142
    %v167 = vpack.c.b16 %v145, %v144
    %v168 = vpack.c.b16 %v147, %v146
    %v169 = vpack.c.b16 %v149, %v148
    %v170 = vpack.c.b16 %v151, %v150
    %v171 = vpack.c.b16 %v153, %v152
    %v172 = vpack.c.b16 %v155, %v154
    %v173 = vpack.c.b16 %v157, %v156
    %v174 = vpack.c.b16 %v159, %v158
    %v175 = vpack.c.b16 %v161, %v160
    %v176 = vpack.c.b16 %v163, %v162
    %v206 = vunpack.c.l.b16 %v89
    %v207 = vunpack.c.l.b16 %v90
    %v208 = vunpack.c.l.b16 %v91
    %v209 = vunpack.c.l.b16 %v92
    %v210 = vunpack.c.l.b16 %v93
    %v211 = vunpack.c.l.b16 %v94
    %v212 = vunpack.c.l.b16 %v95
    %v213 = vunpack.c.l.b16 %v96
    %v214 = vunpack.c.l.b16 %v97
    %v215 = vunpack.c.l.b16 %v98
    %v216 = vunpack.c.l.b16 %v99
    %v217 = vunpack.c.l.b16 %v100
    %v218 = vunpack.c.l.b16 %v101
    %v219 = vunpack.c.l.b16 %v102
    %v220 = vunpack.c.l.b16 %v103
    %v221 = vunpack.c.l.b16 %v104
    %v222 = vpack.c.b16 %v207, %v206
    %v223 = vpack.c.b16 %v209, %v208
    %v224 = vpack.c.b16 %v211, %v210
    %v225 = vpack.c.b16 %v213, %v212
    %v226 = vpack.c.b16 %v215, %v214
    %v227 = vpack.c.b16 %v217, %v216
    %v228 = vpack.c.b16 %v219, %v218
    %v229 = vpack.c.b16 %v221, %v220
    %238 = vmatprep.subr.bf16.mxu0 0
    %239 = vmatpush1.bf16.msra.mxu0 %v222
    %240 = vmatprep.subr.bf16.mxu0 0
    %241 = vmatpush1.bf16.msra.mxu0 %v223
    %242 = vmatprep.subr.bf16.mxu0 0
    %243 = vmatpush1.bf16.msra.mxu0 %v224
    %244 = vmatprep.subr.bf16.mxu0 0
    %245 = vmatpush1.bf16.msra.mxu0 %v225
    %246 = vmatprep.subr.bf16.mxu0 0
    %247 = vmatpush1.bf16.msra.mxu0 %v226
    %248 = vmatprep.subr.bf16.mxu0 0
    %249 = vmatpush1.bf16.msra.mxu0 %v227
    %250 = vmatprep.subr.bf16.mxu0 0
    %251 = vmatpush1.bf16.msra.mxu0 %v228
    %252 = vmatprep.subr.bf16.mxu0 0
    %253 = vmatpush1.bf16.msra.mxu0 %v229
    %254 = vmatprep.subr.bf16.mxu0 0
    %255 = vmatpush1.bf16.msra.mxu0 0
    %256 = vmatprep.subr.bf16.mxu0 0
    %257 = vmatpush1.bf16.msra.mxu0 0
    %258 = vmatprep.subr.bf16.mxu0 0
    %259 = vmatpush1.bf16.msra.mxu0 0
    %260 = vmatprep.subr.bf16.mxu0 0
    %261 = vmatpush1.bf16.msra.mxu0 0
    %262 = vmatprep.subr.bf16.mxu0 0
    %263 = vmatpush1.bf16.msra.mxu0 0
    %264 = vmatprep.subr.bf16.mxu0 0
    %265 = vmatpush1.bf16.msra.mxu0 0
    %266 = vmatprep.subr.bf16.mxu0 0
    %267 = vmatpush1.bf16.msra.mxu0 0
    %268 = vmatprep.subr.bf16.mxu0 0
    %269 = vmatpush1.bf16.msra.mxu0 0
    %270 = vmatprep.mubr.bf16.mxu0 0
    %271 = vmatmul.mubr.bf16.gmra.mrb[0].mxu0 %v164
    %v272 = vpop.f32.mrb[0].mxu0
    %v273 = vadd.f32 %v110, %v272
    %v274 = vpop.f32.mrb[0].mxu0
    %v275 = vpop.f32.mrb[0].mxu0
    %v276 = vadd.f32 %v110, %v275
    %v277 = vpop.f32.mrb[0].mxu0
    %278 = vmatprep.mubr.bf16.mxu0 0
    %279 = vmatmul.mubr.bf16.gmra.mrb[0].mxu0 %v165
    %v280 = vpop.f32.mrb[0].mxu0
    %v281 = vadd.f32 %v110, %v280
    %v282 = vpop.f32.mrb[0].mxu0
    %v283 = vpop.f32.mrb[0].mxu0
    %v284 = vadd.f32 %v110, %v283
    %v285 = vpop.f32.mrb[0].mxu0
    %286 = vmatprep.mubr.bf16.mxu0 0
    %287 = vmatmul.mubr.bf16.gmra.mrb[0].mxu0 %v166
    %v288 = vpop.f32.mrb[0].mxu0
    %v289 = vadd.f32 %v110, %v288
    %v290 = vpop.f32.mrb[0].mxu0
    %v291 = vpop.f32.mrb[0].mxu0
    %v292 = vadd.f32 %v110, %v291
    %v293 = vpop.f32.mrb[0].mxu0
    %294 = vmatprep.mubr.bf16.mxu0 0
    %295 = vmatmul.mubr.bf16.gmra.mrb[0].mxu0 %v167
    %v296 = vpop.f32.mrb[0].mxu0
    %v297 = vadd.f32 %v110, %v296
    %v298 = vpop.f32.mrb[0].mxu0
    %v299 = vpop.f32.mrb[0].mxu0
    %v300 = vadd.f32 %v110, %v299
    %v301 = vpop.f32.mrb[0].mxu0
    %302 = vmatprep.mubr.bf16.mxu0 0
    %303 = vmatmul.mubr.bf16.gmra.mrb[0].mxu0 %v168
    %v304 = vpop.f32.mrb[0].mxu0
    %v305 = vadd.f32 %v110, %v304
    %v306 = vpop.f32.mrb[0].mxu0
    %v307 = vpop.f32.mrb[0].mxu0
    %v308 = vadd.f32 %v110, %v307
    %v309 = vpop.f32.mrb[0].mxu0
    %310 = vmatprep.mubr.bf16.mxu0 0
    %311 = vmatmul.mubr.bf16.gmra.mrb[0].mxu0 %v169
    %v312 = vpop.f32.mrb[0].mxu0
    %v313 = vadd.f32 %v110, %v312
    %v314 = vpop.f32.mrb[0].mxu0
    %v315 = vpop.f32.mrb[0].mxu0
    %v316 = vadd.f32 %v110, %v315
    %v317 = vpop.f32.mrb[0].mxu0
    %318 = vmatprep.mubr.bf16.mxu0 0
    %319 = vmatmul.mubr.bf16.gmra.mrb[0].mxu0 %v170
    %v320 = vpop.f32.mrb[0].mxu0
    %v321 = vadd.f32 %v110, %v320
    %v322 = vpop.f32.mrb[0].mxu0
    %v323 = vpop.f32.mrb[0].mxu0
    %v324 = vadd.f32 %v110, %v323
    %v325 = vpop.f32.mrb[0].mxu0
    %326 = vmatprep.mubr.bf16.mxu0 0
    %327 = vmatmul.mubr.bf16.gmra.mrb[0].mxu0 %v171
    %v328 = vpop.f32.mrb[0].mxu0
    %v329 = vadd.f32 %v110, %v328
    %v330 = vpop.f32.mrb[0].mxu0
    %v331 = vpop.f32.mrb[0].mxu0
    %v332 = vadd.f32 %v110, %v331
    %v333 = vpop.f32.mrb[0].mxu0
    %334 = vmatprep.mubr.bf16.mxu0 0
    %335 = vmatmul.mubr.bf16.gmra.mrb[0].mxu0 %v172
    %v336 = vpop.f32.mrb[0].mxu0
    %v337 = vadd.f32 %v110, %v336
    %v338 = vpop.f32.mrb[0].mxu0
    %v339 = vpop.f32.mrb[0].mxu0
    %v340 = vadd.f32 %v110, %v339
    %v341 = vpop.f32.mrb[0].mxu0
    %342 = vmatprep.mubr.bf16.mxu0 0
    %343 = vmatmul.mubr.bf16.gmra.mrb[0].mxu0 %v173
    %v344 = vpop.f32.mrb[0].mxu0
    %v345 = vadd.f32 %v110, %v344
    %v346 = vpop.f32.mrb[0].mxu0
    %v347 = vpop.f32.mrb[0].mxu0
    %v348 = vadd.f32 %v110, %v347
    %v349 = vpop.f32.mrb[0].mxu0
    %350 = vmatprep.mubr.bf16.mxu0 0
    %351 = vmatmul.mubr.bf16.gmra.mrb[0].mxu0 %v174
    %v352 = vpop.f32.mrb[0].mxu0
    %v353 = vadd.f32 %v110, %v352
    %v354 = vpop.f32.mrb[0].mxu0
    %v355 = vpop.f32.mrb[0].mxu0
    %v356 = vadd.f32 %v110, %v355
    %v357 = vpop.f32.mrb[0].mxu0
    %358 = vmatprep.mubr.bf16.mxu0 0
    %359 = vmatmul.mubr.bf16.gmra.mrb[0].mxu0 %v175
    %v360 = vpop.f32.mrb[0].mxu0
    %v361 = vadd.f32 %v110, %v360
    %v362 = vpop.f32.mrb[0].mxu0
    %v363 = vpop.f32.mrb[0].mxu0
    %v364 = vadd.f32 %v110, %v363
    %v365 = vpop.f32.mrb[0].mxu0
    %366 = vmatprep.mubr.bf16.mxu0 0
    %367 = vmatmul.mubr.bf16.gmra.mrb[0].mxu0 %v176
    %v368 = vpop.f32.mrb[0].mxu0
    %v369 = vadd.f32 %v110, %v368
    %v370 = vpop.f32.mrb[0].mxu0
    %v371 = vpop.f32.mrb[0].mxu0
    %v372 = vadd.f32 %v110, %v371
    %v373 = vpop.f32.mrb[0].mxu0
    %374 = vdwg.mxu0
    %v375 = vmax.f32 %v273, 0.0
    %v376 = vmax.f32 %v276, 0.0
    %v377 = vmax.f32 %v281, 0.0
    %v378 = vmax.f32 %v284, 0.0
    %v379 = vmax.f32 %v289, 0.0
    %v380 = vmax.f32 %v292, 0.0
    %v381 = vmax.f32 %v297, 0.0
    %v382 = vmax.f32 %v300, 0.0
    %v383 = vmax.f32 %v305, 0.0
    %v384 = vmax.f32 %v308, 0.0
    %v385 = vmax.f32 %v313, 0.0
    %v386 = vmax.f32 %v316, 0.0
    %v387 = vmax.f32 %v321, 0.0
    %v388 = vmax.f32 %v324, 0.0
    %v389 = vmax.f32 %v329, 0.0
    %v390 = vmax.f32 %v332, 0.0
    %v391 = vmax.f32 %v337, 0.0
    %v392 = vmax.f32 %v340, 0.0
    %v393 = vmax.f32 %v345, 0.0
    %v394 = vmax.f32 %v348, 0.0
    %v395 = vmax.f32 %v353, 0.0
    %v396 = vmax.f32 %v356, 0.0
    %v397 = vmax.f32 %v361, 0.0
    %v398 = vmax.f32 %v364, 0.0
    %v399 = vmax.f32 %v369, 0.0
    %v400 = vmax.f32 %v372, 0.0
    %v401 = vmul.f32 %v375, %v375
    %v402 = vmul.f32 %v376, %v376
    %v403 = vmul.f32 %v377, %v377
    %v404 = vmul.f32 %v378, %v378
    %v405 = vmul.f32 %v379, %v379
    %v406 = vmul.f32 %v380, %v380
    %v407 = vmul.f32 %v381, %v381
    %v408 = vmul.f32 %v382, %v382
    %v409 = vmul.f32 %v383, %v383
    %v410 = vmul.f32 %v384, %v384
    %v411 = vmul.f32 %v385, %v385
    %v412 = vmul.f32 %v386, %v386
    %v413 = vmul.f32 %v387, %v387
    %v414 = vmul.f32 %v388, %v388
    %v415 = vmul.f32 %v389, %v389
    %v416 = vmul.f32 %v390, %v390
    %v417 = vmul.f32 %v391, %v391
    %v418 = vmul.f32 %v392, %v392
    %v419 = vmul.f32 %v393, %v393
    %v420 = vmul.f32 %v394, %v394
    %v421 = vmul.f32 %v395, %v395
    %v422 = vmul.f32 %v396, %v396
    %v423 = vmul.f32 %v397, %v397
    %v424 = vmul.f32 %v398, %v398
    %v425 = vmul.f32 %v399, %v399
    %v426 = vmul.f32 %v400, %v400
    %427 = vadd.xlane.f32.xlu0 %v401
    %v428 = vpop.xlane.xlu0 %427
    %429 = vadd.xlane.f32.xlu0 %v402
    %v430 = vpop.xlane.xlu0 %429
    %431 = vadd.xlane.f32.xlu0 %v403
    %v432 = vpop.xlane.xlu0 %431
    %433 = vadd.xlane.f32.xlu0 %v404
    %v434 = vpop.xlane.xlu0 %433
    %435 = vadd.xlane.f32.xlu0 %v405
    %v436 = vpop.xlane.xlu0 %435
    %437 = vadd.xlane.f32.xlu0 %v406
    %v438 = vpop.xlane.xlu0 %437
    %439 = vadd.xlane.f32.xlu0 %v407
    %v440 = vpop.xlane.xlu0 %439
    %441 = vadd.xlane.f32.xlu0 %v408
    %v442 = vpop.xlane.xlu0 %441
    %443 = vadd.xlane.f32.xlu0 %v409
    %v444 = vpop.xlane.xlu0 %443
    %445 = vadd.xlane.f32.xlu0 %v410
    %v446 = vpop.xlane.xlu0 %445
    %447 = vadd.xlane.f32.xlu0 %v411
    %v448 = vpop.xlane.xlu0 %447
    %449 = vadd.xlane.f32.xlu0 %v412
    %v450 = vpop.xlane.xlu0 %449
    %451 = vadd.xlane.f32.xlu0 %v413
    %v452 = vpop.xlane.xlu0 %451
    %453 = vadd.xlane.f32.xlu0 %v414
    %v454 = vpop.xlane.xlu0 %453
    %455 = vadd.xlane.f32.xlu0 %v415
    %v456 = vpop.xlane.xlu0 %455
    %457 = vadd.xlane.f32.xlu0 %v416
    %v458 = vpop.xlane.xlu0 %457
    %459 = vadd.xlane.f32.xlu0 %v417
    %v460 = vpop.xlane.xlu0 %459
    %461 = vadd.xlane.f32.xlu0 %v418
    %v462 = vpop.xlane.xlu0 %461
    %463 = vadd.xlane.f32.xlu0 %v419
    %v464 = vpop.xlane.xlu0 %463
    %465 = vadd.xlane.f32.xlu0 %v420
    %v466 = vpop.xlane.xlu0 %465
    %467 = vadd.xlane.f32.xlu0 %v421
    %v468 = vpop.xlane.xlu0 %467
    %469 = vadd.xlane.f32.xlu0 %v422
    %v470 = vpop.xlane.xlu0 %469
    %471 = vadd.xlane.f32.xlu0 %v423
    %v472 = vpop.xlane.xlu0 %471
    %473 = vadd.xlane.f32.xlu0 %v424
    %v474 = vpop.xlane.xlu0 %473
    %475 = vadd.xlane.f32.xlu0 %v425
    %v476 = vpop.xlane.xlu0 %475
    %477 = vadd.xlane.f32.xlu0 %v426
    %v478 = vpop.xlane.xlu0 %477
    %v479 = vmax.f32 %v428, 1e-24
    %v480 = vmax.f32 %v430, 1e-24
    %v481 = vmax.f32 %v432, 1e-24
    %v482 = vmax.f32 %v434, 1e-24
    %v483 = vmax.f32 %v436, 1e-24
    %v484 = vmax.f32 %v438, 1e-24
    %v485 = vmax.f32 %v440, 1e-24
    %v486 = vmax.f32 %v442, 1e-24
    %v487 = vmax.f32 %v444, 1e-24
    %v488 = vmax.f32 %v446, 1e-24
    %v489 = vmax.f32 %v448, 1e-24
    %v490 = vmax.f32 %v450, 1e-24
    %v491 = vmax.f32 %v452, 1e-24
    %v492 = vmax.f32 %v454, 1e-24
    %v493 = vmax.f32 %v456, 1e-24
    %v494 = vmax.f32 %v458, 1e-24
    %v495 = vmax.f32 %v460, 1e-24
    %v496 = vmax.f32 %v462, 1e-24
    %v497 = vmax.f32 %v464, 1e-24
    %v498 = vmax.f32 %v466, 1e-24
    %v499 = vmax.f32 %v468, 1e-24
    %v500 = vmax.f32 %v470, 1e-24
    %v501 = vmax.f32 %v472, 1e-24
    %v502 = vmax.f32 %v474, 1e-24
    %v503 = vmax.f32 %v476, 1e-24
    %v504 = vmax.f32 %v478, 1e-24
    %v505 = vrsqrt.pop %v479
    %v506 = vrsqrt.pop %v480
    %v507 = vrsqrt.pop %v481
    %v508 = vrsqrt.pop %v482
    %v509 = vrsqrt.pop %v483
    %v510 = vrsqrt.pop %v484
    %v511 = vrsqrt.pop %v485
    %v512 = vrsqrt.pop %v486
    %v513 = vrsqrt.pop %v487
    %v514 = vrsqrt.pop %v488
    %v515 = vrsqrt.pop %v489
    %v516 = vrsqrt.pop %v490
    %v517 = vrsqrt.pop %v491
    %v518 = vrsqrt.pop %v492
    %v519 = vrsqrt.pop %v493
    %v520 = vrsqrt.pop %v494
    %v521 = vrsqrt.pop %v495
    %v522 = vrsqrt.pop %v496
    %v523 = vrsqrt.pop %v497
    %v524 = vrsqrt.pop %v498
    %v525 = vrsqrt.pop %v499
    %v526 = vrsqrt.pop %v500
    %v527 = vrsqrt.pop %v501
    %v528 = vrsqrt.pop %v502
    %v529 = vrsqrt.pop %v503
    %v530 = vrsqrt.pop %v504
    %v531 = vmul.f32 %v375, %v505
    %v532 = vmul.f32 %v376, %v506
    %v533 = vmul.f32 %v377, %v507
    %v534 = vmul.f32 %v378, %v508
    %v535 = vmul.f32 %v379, %v509
    %v536 = vmul.f32 %v380, %v510
    %v537 = vmul.f32 %v381, %v511
    %v538 = vmul.f32 %v382, %v512
    %v539 = vmul.f32 %v383, %v513
    %v540 = vmul.f32 %v384, %v514
    %v541 = vmul.f32 %v385, %v515
    %v542 = vmul.f32 %v386, %v516
    %v543 = vmul.f32 %v387, %v517
    %v544 = vmul.f32 %v388, %v518
    %v545 = vmul.f32 %v389, %v519
    %v546 = vmul.f32 %v390, %v520
    %v547 = vmul.f32 %v391, %v521
    %v548 = vmul.f32 %v392, %v522
    %v549 = vmul.f32 %v393, %v523
    %v550 = vmul.f32 %v394, %v524
    %v551 = vmul.f32 %v395, %v525
    %v552 = vmul.f32 %v396, %v526
    %v553 = vmul.f32 %v397, %v527
    %v554 = vmul.f32 %v398, %v528
    %v555 = vmul.f32 %v399, %v529
    %v556 = vmul.f32 %v400, %v530
    %v557 = vpack.c.bf16 %v532, %v531
    %v558 = vpack.c.bf16 %v534, %v533
    %v559 = vpack.c.bf16 %v536, %v535
    %v560 = vpack.c.bf16 %v538, %v537
    %v561 = vpack.c.bf16 %v540, %v539
    %v562 = vpack.c.bf16 %v542, %v541
    %v563 = vpack.c.bf16 %v544, %v543
    %v564 = vpack.c.bf16 %v546, %v545
    %v565 = vpack.c.bf16 %v548, %v547
    %v566 = vpack.c.bf16 %v550, %v549
    %v567 = vpack.c.bf16 %v552, %v551
    %v568 = vpack.c.bf16 %v554, %v553
    %v569 = vpack.c.bf16 %v556, %v555
    %v570 = vld [vmem:[#allocation7] sm:$0xf]
    %v571 = vld [vmem:[#allocation7 + $0x4] sm:$0xf]
    %v572 = vld [vmem:[#allocation7 + $0x8] sm:$0xf]
    %v573 = vld [vmem:[#allocation7 + $0xc] sm:$0xf]
    %v574 = vld [vmem:[#allocation7 + $0x10] sm:$0xf]
    %v575 = vld [vmem:[#allocation7 + $0x14] sm:$0xf]
    %v576 = vld [vmem:[#allocation7 + $0x18] sm:$0xf]
    %v577 = vld [vmem:[#allocation7 + $0x1c] sm:$0xf]
    %v578 = vld [vmem:[#allocation7 + $0x20] sm:$0xf]
    %v579 = vld [vmem:[#allocation7 + $0x24] sm:$0xf]
    %v580 = vld [vmem:[#allocation7 + $0x28] sm:$0xf]
    %v581 = vld [vmem:[#allocation7 + $0x2c] sm:$0xf]
    %v582 = vld [vmem:[#allocation7 + $0x30] sm:$0xf]
    %v583 = vld [vmem:[#allocation7 + $0x34] sm:$0xf]
    %v584 = vld [vmem:[#allocation7 + $0x38] sm:$0xf]
    %v585 = vld [vmem:[#allocation7 + $0x3c] sm:$0xf]
    %v586 = vld [vmem:[%s4] sm:$0x1]
    %v588 = vlaneseq
    %v589 = vshrl.u32 %v588, 7
    %v590 = vsub.s32 0, %v589
    %v591 = vrot.slane %v586, %v590
    %v609 = vunpack.c.l.b16 %v570
    %v610 = vunpack.c.l.b16 %v571
    %v611 = vunpack.c.l.b16 %v572
    %v612 = vunpack.c.l.b16 %v573
    %v613 = vunpack.c.l.b16 %v574
    %v614 = vunpack.c.l.b16 %v575
    %v615 = vunpack.c.l.b16 %v576
    %v616 = vunpack.c.l.b16 %v577
    %v617 = vunpack.c.l.b16 %v578
    %v618 = vunpack.c.l.b16 %v579
    %v619 = vunpack.c.l.b16 %v580
    %v620 = vunpack.c.l.b16 %v581
    %v621 = vunpack.c.l.b16 %v582
    %v622 = vunpack.c.l.b16 %v583
    %v623 = vunpack.c.l.b16 %v584
    %v624 = vunpack.c.l.b16 %v585
    %v625 = vpack.c.b16 %v610, %v609
    %v626 = vpack.c.b16 %v612, %v611
    %v627 = vpack.c.b16 %v614, %v613
    %v628 = vpack.c.b16 %v616, %v615
    %v629 = vpack.c.b16 %v618, %v617
    %v630 = vpack.c.b16 %v620, %v619
    %v631 = vpack.c.b16 %v622, %v621
    %v632 = vpack.c.b16 %v624, %v623
    %641 = vmatprep.subr.bf16.mxu0 0
    %642 = vmatpush1.bf16.msra.mxu0 %v625
    %643 = vmatprep.subr.bf16.mxu0 0
    %644 = vmatpush1.bf16.msra.mxu0 %v626
    %645 = vmatprep.subr.bf16.mxu0 0
    %646 = vmatpush1.bf16.msra.mxu0 %v627
    %647 = vmatprep.subr.bf16.mxu0 0
    %648 = vmatpush1.bf16.msra.mxu0 %v628
    %649 = vmatprep.subr.bf16.mxu0 0
    %650 = vmatpush1.bf16.msra.mxu0 %v629
    %651 = vmatprep.subr.bf16.mxu0 0
    %652 = vmatpush1.bf16.msra.mxu0 %v630
    %653 = vmatprep.subr.bf16.mxu0 0
    %654 = vmatpush1.bf16.msra.mxu0 %v631
    %655 = vmatprep.subr.bf16.mxu0 0
    %656 = vmatpush1.bf16.msra.mxu0 %v632
    %657 = vmatprep.subr.bf16.mxu0 0
    %658 = vmatpush1.bf16.msra.mxu0 0
    %659 = vmatprep.subr.bf16.mxu0 0
    %660 = vmatpush1.bf16.msra.mxu0 0
    %661 = vmatprep.subr.bf16.mxu0 0
    %662 = vmatpush1.bf16.msra.mxu0 0
    %663 = vmatprep.subr.bf16.mxu0 0
    %664 = vmatpush1.bf16.msra.mxu0 0
    %665 = vmatprep.subr.bf16.mxu0 0
    %666 = vmatpush1.bf16.msra.mxu0 0
    %667 = vmatprep.subr.bf16.mxu0 0
    %668 = vmatpush1.bf16.msra.mxu0 0
    %669 = vmatprep.subr.bf16.mxu0 0
    %670 = vmatpush1.bf16.msra.mxu0 0
    %671 = vmatprep.subr.bf16.mxu0 0
    %672 = vmatpush1.bf16.msra.mxu0 0
    %673 = vmatprep.mubr.bf16.mxu0 0
    %674 = vmatmul.mubr.bf16.gmra.mrb[0].mxu0 %v557
    %v675 = vpop.f32.mrb[0].mxu0
    %v676 = vadd.f32 %v591, %v675
    %v677 = vpop.f32.mrb[0].mxu0
    %v678 = vpop.f32.mrb[0].mxu0
    %v679 = vadd.f32 %v591, %v678
    %v680 = vpop.f32.mrb[0].mxu0
    %681 = vmatprep.mubr.bf16.mxu0 0
    %682 = vmatmul.mubr.bf16.gmra.mrb[0].mxu0 %v558
    %v683 = vpop.f32.mrb[0].mxu0
    %v684 = vadd.f32 %v591, %v683
    %v685 = vpop.f32.mrb[0].mxu0
    %v686 = vpop.f32.mrb[0].mxu0
    %v687 = vadd.f32 %v591, %v686
    %v688 = vpop.f32.mrb[0].mxu0
    %689 = vmatprep.mubr.bf16.mxu0 0
    %690 = vmatmul.mubr.bf16.gmra.mrb[0].mxu0 %v559
    %v691 = vpop.f32.mrb[0].mxu0
    %v692 = vadd.f32 %v591, %v691
    %v693 = vpop.f32.mrb[0].mxu0
    %v694 = vpop.f32.mrb[0].mxu0
    %v695 = vadd.f32 %v591, %v694
    %v696 = vpop.f32.mrb[0].mxu0
    %697 = vmatprep.mubr.bf16.mxu0 0
    %698 = vmatmul.mubr.bf16.gmra.mrb[0].mxu0 %v560
    %v699 = vpop.f32.mrb[0].mxu0
    %v700 = vadd.f32 %v591, %v699
    %v701 = vpop.f32.mrb[0].mxu0
    %v702 = vpop.f32.mrb[0].mxu0
    %v703 = vadd.f32 %v591, %v702
    %v704 = vpop.f32.mrb[0].mxu0
    %705 = vmatprep.mubr.bf16.mxu0 0
    %706 = vmatmul.mubr.bf16.gmra.mrb[0].mxu0 %v561
    %v707 = vpop.f32.mrb[0].mxu0
    %v708 = vadd.f32 %v591, %v707
    %v709 = vpop.f32.mrb[0].mxu0
    %v710 = vpop.f32.mrb[0].mxu0
    %v711 = vadd.f32 %v591, %v710
    %v712 = vpop.f32.mrb[0].mxu0
    %713 = vmatprep.mubr.bf16.mxu0 0
    %714 = vmatmul.mubr.bf16.gmra.mrb[0].mxu0 %v562
    %v715 = vpop.f32.mrb[0].mxu0
    %v716 = vadd.f32 %v591, %v715
    %v717 = vpop.f32.mrb[0].mxu0
    %v718 = vpop.f32.mrb[0].mxu0
    %v719 = vadd.f32 %v591, %v718
    %v720 = vpop.f32.mrb[0].mxu0
    %721 = vmatprep.mubr.bf16.mxu0 0
    %722 = vmatmul.mubr.bf16.gmra.mrb[0].mxu0 %v563
    %v723 = vpop.f32.mrb[0].mxu0
    %v724 = vadd.f32 %v591, %v723
    %v725 = vpop.f32.mrb[0].mxu0
    %v726 = vpop.f32.mrb[0].mxu0
    %v727 = vadd.f32 %v591, %v726
    %v728 = vpop.f32.mrb[0].mxu0
    %729 = vmatprep.mubr.bf16.mxu0 0
    %730 = vmatmul.mubr.bf16.gmra.mrb[0].mxu0 %v564
    %v731 = vpop.f32.mrb[0].mxu0
    %v732 = vadd.f32 %v591, %v731
    %v733 = vpop.f32.mrb[0].mxu0
    %v734 = vpop.f32.mrb[0].mxu0
    %v735 = vadd.f32 %v591, %v734
    %v736 = vpop.f32.mrb[0].mxu0
    %737 = vmatprep.mubr.bf16.mxu0 0
    %738 = vmatmul.mubr.bf16.gmra.mrb[0].mxu0 %v565
    %v739 = vpop.f32.mrb[0].mxu0
    %v740 = vadd.f32 %v591, %v739
    %v741 = vpop.f32.mrb[0].mxu0
    %v742 = vpop.f32.mrb[0].mxu0
    %v743 = vadd.f32 %v591, %v742
    %v744 = vpop.f32.mrb[0].mxu0
    %745 = vmatprep.mubr.bf16.mxu0 0
    %746 = vmatmul.mubr.bf16.gmra.mrb[0].mxu0 %v566
    %v747 = vpop.f32.mrb[0].mxu0
    %v748 = vadd.f32 %v591, %v747
    %v749 = vpop.f32.mrb[0].mxu0
    %v750 = vpop.f32.mrb[0].mxu0
    %v751 = vadd.f32 %v591, %v750
    %v752 = vpop.f32.mrb[0].mxu0
    %753 = vmatprep.mubr.bf16.mxu0 0
    %754 = vmatmul.mubr.bf16.gmra.mrb[0].mxu0 %v567
    %v755 = vpop.f32.mrb[0].mxu0
    %v756 = vadd.f32 %v591, %v755
    %v757 = vpop.f32.mrb[0].mxu0
    %v758 = vpop.f32.mrb[0].mxu0
    %v759 = vadd.f32 %v591, %v758
    %v760 = vpop.f32.mrb[0].mxu0
    %761 = vmatprep.mubr.bf16.mxu0 0
    %762 = vmatmul.mubr.bf16.gmra.mrb[0].mxu0 %v568
    %v763 = vpop.f32.mrb[0].mxu0
    %v764 = vadd.f32 %v591, %v763
    %v765 = vpop.f32.mrb[0].mxu0
    %v766 = vpop.f32.mrb[0].mxu0
    %v767 = vadd.f32 %v591, %v766
    %v768 = vpop.f32.mrb[0].mxu0
    %769 = vmatprep.mubr.bf16.mxu0 0
    %770 = vmatmul.mubr.bf16.gmra.mrb[0].mxu0 %v569
    %v771 = vpop.f32.mrb[0].mxu0
    %v772 = vadd.f32 %v591, %v771
    %v773 = vpop.f32.mrb[0].mxu0
    %v774 = vpop.f32.mrb[0].mxu0
    %v775 = vadd.f32 %v591, %v774
    %v776 = vpop.f32.mrb[0].mxu0
    %777 = vdwg.mxu0
    %778 = vst [vmem:[#allocation8] sm:$0xff] %v676
    %779 = vst [vmem:[#allocation8 + $0x8] sm:$0xff] %v679
    %780 = vst [vmem:[#allocation8 + $0x10] sm:$0xff] %v684
    %781 = vst [vmem:[#allocation8 + $0x18] sm:$0xff] %v687
    %782 = vst [vmem:[#allocation8 + $0x20] sm:$0xff] %v692
    %783 = vst [vmem:[#allocation8 + $0x28] sm:$0xff] %v695
    %784 = vst [vmem:[#allocation8 + $0x30] sm:$0xff] %v700
    %785 = vst [vmem:[#allocation8 + $0x38] sm:$0xff] %v703
    %786 = vst [vmem:[#allocation8 + $0x40] sm:$0xff] %v708
    %787 = vst [vmem:[#allocation8 + $0x48] sm:$0xff] %v711
    %788 = vst [vmem:[#allocation8 + $0x50] sm:$0xff] %v716
    %789 = vst [vmem:[#allocation8 + $0x58] sm:$0xff] %v719
    %790 = vst [vmem:[#allocation8 + $0x60] sm:$0xff] %v724
    %791 = vst [vmem:[#allocation8 + $0x68] sm:$0xff] %v727
    %792 = vst [vmem:[#allocation8 + $0x70] sm:$0xff] %v732
    %793 = vst [vmem:[#allocation8 + $0x78] sm:$0xff] %v735
    %794 = vst [vmem:[#allocation8 + $0x80] sm:$0xff] %v740
    %795 = vst [vmem:[#allocation8 + $0x88] sm:$0xff] %v743
    %796 = vst [vmem:[#allocation8 + $0x90] sm:$0xff] %v748
    %797 = vst [vmem:[#allocation8 + $0x98] sm:$0xff] %v751
    %798 = vst [vmem:[#allocation8 + $0xa0] sm:$0xff] %v756
    %799 = vst [vmem:[#allocation8 + $0xa8] sm:$0xff] %v759
    %800 = vst [vmem:[#allocation8 + $0xb0] sm:$0xff] %v764
    %801 = vst [vmem:[#allocation8 + $0xb8] sm:$0xff] %v767
    %802 = vst [vmem:[#allocation8 + $0xc0] sm:$0xff] %v772
    %803 = vst [vmem:[#allocation8 + $0xc8] sm:$0xff] %v775
    // Predicated region
    $region34: #{tpu_custom_call.1} parent=1 // pred_check
      _
    $region35: #{tpu_custom_call.1} parent=1 // pred_check_branch
      %805 = sbr.rel (0) target = $region37
    $region36: #{tpu_custom_call.1} parent=1 // pred_region
      %s807 = ssub.s32 3328, 3328
      %808 = vsyncadd [#allocation4], %s807
      %s809 = sshll.u32 [#allocation8], 4
      %s810 = int_to_ptr.vmem [resolvable:$true] %s809
      %815 = dma.vmem_to_hbm [thread:$0]  %s810, 3328, %s5, [#allocation4], 128, 128, 8
    $region37: #{tpu_custom_call.1} parent=1 // pred_fallthru
      _
    // Predicated region
    $region38: #{tpu_custom_call.1} parent=1 // pred_check
      _
    $region39: #{tpu_custom_call.1} parent=1 // pred_check_branch
      %817 = sbr.rel (0) target = $region41
    $region40: #{tpu_custom_call.1} parent=1 // pred_region
      %818 = dma.done [#allocation4], 3328
    $region41: #{tpu_custom_call.1} parent=1 // pred_fallthru
      _
    %819 = vsyncpa [#allocation3], 1
    %820 = vsyncpa [#allocation6], 1
    %821 = vsyncpa [#allocation4], 1

</llo_original>
